<compile_context>
chip_gen: v7x
topology: tpu7x:2x2x1
jax: 0.10.0
libtpu: 0.0.40
codegen_flags: <defaults>
</compile_context>

<pallas_src>
import jax
import jax.numpy as jnp
from jax.experimental import pallas as pl
from jax.experimental.pallas import tpu as pltpu

LANES = 128
SUBLANES = 8


def _tpu_target():
    """Best-effort chip detection -> (core chunks, per-input block bytes per step)."""
    try:
        dev = jax.devices()[0]
        if dev.platform != "tpu":
            return 1, 2 << 20
        kind = str(getattr(dev, "device_kind", "")).lower()
    except Exception:
        return 1, 2 << 20
    # v7x: 2 TensorCores/chip, ~3.2 TB/s HBM, 64 MiB physical VMEM -> split the
    # row-blocks across cores and use a larger per-step tile.
    if "v7" in kind or "7x" in kind:
        return 2, 4 << 20
    # v4 / v5p megacore: one device drives two TensorCores; keep the split.
    if "v4" in kind or "v5p" in kind:
        return 2, 2 << 20
    # v5e / v6e (single TensorCore): 2 MiB/input per step sits ~85%+ of roofline.
    return 1, 2 << 20


def _make_rmse_kernel(tr, g_pc, rows, full_blocks, needs_mask):
    """Streaming sum-of-squared-difference kernel.

    Grid is (nc, g_pc).  Each step loads a (tr, 128) tile of x and y and adds
    sum((x - y)^2), folded to an (8, 128) partial-sum vector, directly into the
    chunk's resident output block.  Only boundary / duplicated blocks pay for
    the row mask.
    """

    def fold(v):
        # (tr, 128) -> (8, 128): leading-dim split + reduce, VPU adds only.
        return jnp.sum(v.reshape(tr // SUBLANES, SUBLANES, LANES), axis=0)

    def kernel(x_ref, y_ref, o_ref):
        i = pl.program_id(1)

        @pl.when(i == 0)
        def _init():
            o_ref[...] = jnp.zeros_like(o_ref)

        # In-kernel upcast keeps HBM traffic at the native dtype width.
        d = x_ref[...].astype(jnp.float32) - y_ref[...].astype(jnp.float32)
        sq = d * d

        if not needs_mask:
            o_ref[...] += fold(sq)
        else:
            # Unclamped logical block index (the index map may clamp for DMA).
            lb = pl.program_id(0) * g_pc + i

            @pl.when(lb < full_blocks)
            def _full_block():              # fully valid block: no mask overhead
                o_ref[...] += fold(sq)

            @pl.when(lb >= full_blocks)
            def _boundary_block():
                # Partial last block and/or duplicated block from the clamped
                # index map.  Keep this a select: stale VMEM past the end of the
                # array may hold NaN/Inf and must become exactly 0.0.
                row = jax.lax.broadcasted_iota(jnp.int32, sq.shape, 0)
                valid = (lb * tr + row) < rows
                o_ref[...] += fold(jnp.where(valid, sq, 0.0))

    return kernel


def total_loss(x, y):
    """Pallas equivalent of TotalLoss.forward: torch.sqrt(F.mse_loss(x, y))."""
    assert x.shape == y.shape, "mse_loss with default reduction expects same shapes"
    n = x.size
    inv_n = 1.0 / float(n)          # exact division in host double precision
    xf = x.reshape(-1)              # free bitcast of the contiguous array
    yf = y.reshape(-1)

    isx = jnp.dtype(x.dtype).itemsize
    isy = jnp.dtype(y.dtype).itemsize
    # Sublane-group alignment for the narrowest dtype (f32 -> 8 rows, bf16 -> 16, 8-bit -> 32).
    sub_rows = SUBLANES * max(1, 4 // min(isx, isy))

    rows = n // LANES
    if rows < sub_rows:
        # Tiny input: not worth a kernel launch.
        d = xf.astype(jnp.float32) - yf.astype(jnp.float32)
        return jnp.sqrt(jnp.sum(d * d) * jnp.float32(inv_n))

    bulk = rows * LANES
    if bulk < n:
        # Sub-lane tail (< 128 elements) handled in plain JAX.
        # TODO(synk): the prefix slice below still materializes a copy of both
        # inputs when n % 128 != 0 (custom calls can't consume views); removing
        # it needs a 1-D-block kernel with in-kernel 1-D->2-D reshapes, which
        # Mosaic does not reliably support today.
        dt = xf[bulk:].astype(jnp.float32) - yf[bulk:].astype(jnp.float32)
        tail_ss = jnp.sum(dt * dt)
        x2d = xf[:bulk].reshape(rows, LANES)
        y2d = yf[:bulk].reshape(rows, LANES)
    else:
        tail_ss = jnp.float32(0.0)
        x2d = xf.reshape(rows, LANES)   # free: lane-dense slab, no copy
        y2d = yf.reshape(rows, LANES)

    nc_hint, tgt_bytes = _tpu_target()

    # Rows per grid step: ~tgt_bytes per input per step (scales as 4/itemsize).
    tr = max(sub_rows, (tgt_bytes // (LANES * max(isx, isy))) // sub_rows * sub_rows)
    tr = min(tr, (rows // sub_rows) * sub_rows)

    g_total = pl.cdiv(rows, tr)          # total row-blocks
    nc = min(nc_hint, g_total)           # one contiguous chunk per TensorCore
    g_pc = pl.cdiv(g_total, nc)          # row-blocks per chunk
    full_blocks = rows // tr             # blocks needing no mask
    needs_mask = (rows % tr != 0) or (nc * g_pc != g_total)

    def in_map(c, i):
        lb = c * g_pc + i
        if nc * g_pc != g_total:               # static: odd block count
            lb = jnp.minimum(lb, g_total - 1)  # keep DMA in bounds; zeroed in-kernel
        return (lb, 0)

    kernel = _make_rmse_kernel(tr, g_pc, rows, full_blocks, needs_mask)

    in_step_bytes = tr * LANES * (isx + isy)
    cost = pl.CostEstimate(
        flops=3 * bulk,
        transcendentals=0,
        bytes_accessed=bulk * (isx + isy) + nc * SUBLANES * LANES * 4,
    )

    partials = pl.pallas_call(
        kernel,
        out_shape=jax.ShapeDtypeStruct((nc * SUBLANES, LANES), jnp.float32),
        grid_spec=pltpu.PrefetchScalarGridSpec(
            num_scalar_prefetch=0,
            grid=(nc, g_pc),
            in_specs=[
                pl.BlockSpec((tr, LANES), in_map),
                pl.BlockSpec((tr, LANES), in_map),
            ],
            out_specs=pl.BlockSpec((SUBLANES, LANES), lambda c, i: (c, 0)),
        ),
        compiler_params=pltpu.CompilerParams(
            dimension_semantics=("parallel", "arbitrary"),
            # Double-buffered inputs + headroom; explicit so v5e (16 MiB default
            # scoped) and v7x (64 MiB physical) are both handled.
            vmem_limit_bytes=int(max(2 * in_step_bytes + (8 << 20), 16 << 20)),
        ),
        cost_estimate=cost,
    )(x2d, y2d)

    # O(1) scalar epilogue: combine per-chunk partial sums + tail, mean, sqrt.
    total_ss = jnp.sum(partials) + tail_ss
    return jnp.sqrt(total_ss * jnp.float32(inv_n))


if __name__ == "__main__":
    root = jax.random.PRNGKey(0)
    loss_fn = jax.jit(total_loss)

    def check(idx, shape, rtol=1e-5, atol=1e-6):
        kx, ky = jax.random.split(jax.random.fold_in(root, idx))
        x = jax.random.normal(kx, shape, dtype=jnp.float32)
        y = jax.random.normal(ky, shape, dtype=jnp.float32)
        loss = jax.block_until_ready(loss_fn(x, y))
        ref = jnp.sqrt(jnp.mean((x - y) ** 2))
        assert jnp.allclose(loss, ref, rtol=rtol, atol=atol), (shape, loss, ref)

    # Primary small NCHW example consistent with the module's forward.
    check(0, (2, 4, 16, 16))
    # Extra coverage of the streaming / masking / tail paths:
    check(1, (3, 5, 7, 11))                  # n % 128 != 0 -> sub-lane tail in plain JAX
    check(2, (2, 8, 96, 128))                # single full block, no mask
    check(3, (3, 8, 128, 128))               # zero-copy aligned path
    check(4, (5, 7, 200, 128), rtol=1e-4)    # multi-block grid + masked boundary block
    print("KERNEL_OK")
</pallas_src>

<mosaic_0001>
module attributes {stable_mosaic.version = 11 : i64} {
  func.func @kernel(%arg0: i32, %arg1: i32, %arg2: memref<16x128xf32, #tpu.memory_space<vmem>>, %arg3: memref<16x128xf32, #tpu.memory_space<vmem>>, %arg4: memref<8x128xf32, #tpu.memory_space<vmem>>) attributes {dimension_semantics = [#tpu.dimension_semantics<parallel>, #tpu.dimension_semantics<arbitrary>], iteration_bounds = array<i64: 1, 1>, scalar_prefetch = 0 : i64, scratch_operands = 0 : i64, tpu.core_type = #tpu.core_type<tc>, window_params = [{transform_indices = @transform_0, window_bounds = array<i64: 16, 128>}, {transform_indices = @transform_1, window_bounds = array<i64: 16, 128>}, {transform_indices = @transform_2, window_bounds = array<i64: 8, 128>}]} {
    %c0_i32 = arith.constant 0 : i32
    %0 = arith.cmpi eq, %arg1, %c0_i32 : i32
    %1 = arith.extui %0 : i1 to i32
    %c0_i32_0 = arith.constant 0 : i32
    %2 = arith.cmpi ne, %1, %c0_i32_0 : i32
    scf.if %2 {
      %cst_8 = arith.constant 0.000000e+00 : f32
      %12 = vector.broadcast %cst_8 : f32 to vector<8x128xf32>
      %c0_9 = arith.constant 0 : index
      %c0_10 = arith.constant 0 : index
      %13 = vector.load %arg4[%c0_9, %c0_10] : memref<8x128xf32, #tpu.memory_space<vmem>>, vector<8x128xf32>
      tpu.vector_store %arg4[%c0_9, %c0_10], %12 {strides = array<i32>} : memref<8x128xf32, #tpu.memory_space<vmem>>, vector<8x128xf32>,
    } else {
    }
    %c0 = arith.constant 0 : index
    %c0_1 = arith.constant 0 : index
    %3 = vector.load %arg2[%c0, %c0_1] : memref<16x128xf32, #tpu.memory_space<vmem>>, vector<16x128xf32>
    %c0_2 = arith.constant 0 : index
    %c0_3 = arith.constant 0 : index
    %4 = vector.load %arg3[%c0_2, %c0_3] : memref<16x128xf32, #tpu.memory_space<vmem>>, vector<16x128xf32>
    %5 = arith.subf %3, %4 : vector<16x128xf32>
    %6 = arith.mulf %5, %5 : vector<16x128xf32>
    %c0_4 = arith.constant 0 : index
    %c0_5 = arith.constant 0 : index
    %7 = vector.load %arg4[%c0_4, %c0_5] : memref<8x128xf32, #tpu.memory_space<vmem>>, vector<8x128xf32>
    %8 = vector.shape_cast %6 : vector<16x128xf32> to vector<2x8x128xf32>
    %cst = arith.constant dense<0.000000e+00> : vector<8x128xf32>
    %9 = vector.multi_reduction <add>, %8, %cst [0] : vector<2x8x128xf32> to vector<8x128xf32>
    %10 = arith.addf %7, %9 : vector<8x128xf32>
    %c0_6 = arith.constant 0 : index
    %c0_7 = arith.constant 0 : index
    %11 = vector.load %arg4[%c0_6, %c0_7] : memref<8x128xf32, #tpu.memory_space<vmem>>, vector<8x128xf32>
    tpu.vector_store %arg4[%c0_6, %c0_7], %10 {strides = array<i32>} : memref<8x128xf32, #tpu.memory_space<vmem>>, vector<8x128xf32>,
    return
  }
  func.func @transform_0(%arg0: i32, %arg1: i32) -> (i32, i32) {
    %c1_i32 = arith.constant 1 : i32
    %0 = arith.muli %arg0, %c1_i32 : i32
    %1 = arith.addi %0, %arg1 : i32
    %c0_i32 = arith.constant 0 : i32
    %c0_i32_0 = arith.constant 0 : i32
    return %1, %c0_i32 : i32, i32
  }
  func.func @transform_1(%arg0: i32, %arg1: i32) -> (i32, i32) {
    %c1_i32 = arith.constant 1 : i32
    %0 = arith.muli %arg0, %c1_i32 : i32
    %1 = arith.addi %0, %arg1 : i32
    %c0_i32 = arith.constant 0 : i32
    %c0_i32_0 = arith.constant 0 : i32
    return %1, %c0_i32 : i32, i32
  }
  func.func @transform_2(%arg0: i32, %arg1: i32) -> (i32, i32) {
    %c0_i32 = arith.constant 0 : i32
    %c0_i32_0 = arith.constant 0 : i32
    return %arg0, %c0_i32 : i32, i32
  }
}

</mosaic_0001>

<llo_original>
// kernel: total_loss.1
$region0: #{total_loss.1}
  #allocation0 [shape = 'u32[]', space=smem, size = 0x4, offset = 0x4, fixed_abs, tag = 'smem constant byte address 0x4 - core index']
  #allocation1 [shape = 'u32[144,128]{1,0:T(1,128)}', space=vmem, size = 0x12000, scoped, tag = 'internal scratch']
  %s0 = inlined_call_operand.vmem [shape: f32[16,128], index: 0, kind: input, shape index: {}]
  %s1 = inlined_call_operand.vmem [shape: f32[16,128], index: 1, kind: input, shape index: {}]
  %s2 = inlined_call_operand.vmem [shape: f32[8,128], index: 2, kind: output, shape index: {}]
  %s3 = sld [smem:[#allocation0]]
  $region22: #{total_loss.1} parent=0
    _
  %s5 = ssub.s32 1, %s3
  %s6 = scalar_select 0, %s5, %s3
  // Predicated region
  $region2: #{total_loss.1} parent=0 // pred_check
    _
  $region3: #{total_loss.1} parent=0 // pred_check_branch
    %8 = sbr.rel (0) target = $region5
  $region4: #{total_loss.1} parent=0 // pred_region
    %s9 = sadd.s32 0, 0
    %s10 = smul.u32 2, %s9
    %p11 = scmp.lt.s32.totalorder %s10, 1
    %s12 = scalar_select %p11, %s10, 1
    %s13 = smul.addr %s12, 8
    %s14 = scalar_lea.vmem %s0, %s13
    %s15 = sadd.s32 0, 0
    %s16 = smul.u32 2, %s15
  $region5: #{total_loss.1} parent=0 // pred_fallthru
    _
  // Predicated region
  $region6: #{total_loss.1} parent=0 // pred_check
    _
  $region7: #{total_loss.1} parent=0 // pred_check_branch
    %18 = sbr.rel (0) target = $region9
  $region8: #{total_loss.1} parent=0 // pred_region
    %s19 = sadd.s32 0, 0
    %s20 = smul.u32 2, %s19
    %p21 = scmp.lt.s32.totalorder %s20, 1
    %s22 = scalar_select %p21, %s20, 1
    %s23 = smul.addr %s22, 8
    %s24 = scalar_lea.vmem %s1, %s23
    %s25 = sadd.s32 0, 0
    %s26 = smul.u32 2, %s25
  $region9: #{total_loss.1} parent=0 // pred_fallthru
    _
  %s27 = sadd.s32 0, 0
  %s28 = smul.u32 2, %s27
  %p29 = scmp.lt.s32.totalorder %s28, 1
  %s30 = scalar_select %p29, %s28, 1
  %s31 = smul.addr %s30, 8
  %s32 = scalar_lea.vmem %s0, %s31
  %s33 = sadd.s32 0, 0
  %s34 = smul.u32 2, %s33
  %p35 = scmp.lt.s32.totalorder %s34, 1
  %s36 = scalar_select %p35, %s34, 1
  %s37 = smul.addr %s36, 8
  %s38 = scalar_lea.vmem %s1, %s37
  %s39 = sadd.s32 0, 0
  %s40 = smul.u32 2, %s39
  %p41 = scmp.lt.s32.totalorder %s40, 1
  %s42 = scalar_select %p41, %s40, 1
  %s43 = smul.addr %s42, 8
  %s44 = scalar_lea.vmem %s0, %s43
  %s45 = sadd.s32 0, 0
  %s46 = smul.u32 2, %s45
  %s47 = sadd.s32 0, 0
  %s48 = smul.u32 2, %s47
  %p49 = scmp.lt.s32.totalorder %s48, 1
  %s50 = scalar_select %p49, %s48, 1
  %s51 = smul.addr %s50, 8
  %s52 = scalar_lea.vmem %s1, %s51
  %s53 = sadd.s32 0, 0
  %s54 = smul.u32 2, %s53
  %p55 = scmp.eq.s32.totalorder 0, 0
  // Predicated region
  $region10: #{total_loss.1} parent=0 // pred_check
    %p56 = pneg %p55
  $region11: #{total_loss.1} parent=0 // pred_check_branch
    %58 = sbr.rel (%p56) target = $region13
  $region12: #{total_loss.1} parent=0 // pred_region
    %59 = vst [vmem:[%s2] sm:$0xff] 0.0
  $region13: #{total_loss.1} parent=0 // pred_fallthru
    _
  %v60 = vld [vmem:[%s44] sm:$0xff]
  %v61 = vld [vmem:[%s44 + $0x8] sm:$0xff]
  %v62 = vld [vmem:[%s52] sm:$0xff]
  %v63 = vld [vmem:[%s52 + $0x8] sm:$0xff]
  %v64 = vsub.f32 %v60, %v62
  %v65 = vsub.f32 %v61, %v63
  %v66 = vmul.f32 %v64, %v64
  %v67 = vmul.f32 %v65, %v65
  %v68 = vld [vmem:[%s2] sm:$0xff]
  %v69 = vadd.f32 %v66, %v67
  %v70 = vadd.f32 %v68, %v69
  %71 = vst [vmem:[%s2] sm:$0xff] %v70
  // Predicated region
  $region14: #{total_loss.1} parent=0 // pred_check
    _
  $region15: #{total_loss.1} parent=0 // pred_check_branch
    %73 = sbr.rel (0) target = $region17
  $region16: #{total_loss.1} parent=0 // pred_region
    _
  $region17: #{total_loss.1} parent=0 // pred_fallthru
    _
  // Predicated region
  $region18: #{total_loss.1} parent=0 // pred_check
    _
  $region19: #{total_loss.1} parent=0 // pred_check_branch
    %75 = sbr.rel (0) target = $region21
  $region20: #{total_loss.1} parent=0 // pred_region
    _
  $region21: #{total_loss.1} parent=0 // pred_fallthru
    _

</llo_original>
